<compile_context>
chip_gen: v5e
topology: v5e:2x2
jax: 0.10.0
libtpu: 0.0.40
codegen_flags: <defaults>
</compile_context>

<pallas_src>
import functools
import math

import jax
import jax.numpy as jnp
from jax.experimental import pallas as pl
from jax.experimental.pallas import tpu as pltpu


def _router_kernel(prompt_ref, vit_ref,
                   wq_ref, wkv_ref, wo_ref,
                   bq_ref, bkv_ref, bo_ref,
                   fcw_ref, fcb_ref,
                   alpha_ref,
                   *, num_heads, gating, normalize_sigmoid):
    """One batch *block* (bs elements) per grid step."""
    bs, Lq, E = prompt_ref.shape
    Lk = vit_ref.shape[1]
    head_dim = E // num_heads
    inv_lq = 1.0 / Lq

    # Flatten the batch block so the projection matmuls present M = bs*Lq
    # (resp. bs*Lk) rows to the MXU.  The 1/sqrt(head_dim) scale is already
    # folded into wq/bq by the wrapper.
    prompt = prompt_ref[...].reshape(bs * Lq, E)          # bf16
    vit = vit_ref[...].reshape(bs * Lk, E)                # bf16

    q = (jnp.dot(prompt, wq_ref[...], preferred_element_type=jnp.float32)
         + bq_ref[...])                                   # (bs*Lq, E)  f32
    kv = (jnp.dot(vit, wkv_ref[...], preferred_element_type=jnp.float32)
          + bkv_ref[...])                                 # (bs*Lk, 2E) f32

    q3 = q.astype(jnp.bfloat16).reshape(bs, Lq, E)
    kv3 = kv.astype(jnp.bfloat16).reshape(bs, Lk, 2 * E)
    wo = wo_ref[...]                                      # (E, E) bf16

    # Per-head attention; query-mean pooling happens BEFORE the P@V matmul and
    # the output projection is distributed per head, so no lane-axis concat
    # and no (bs*Lq, E) attention-output intermediate ever materializes.
    pooled_proj = jnp.zeros((bs, E), jnp.float32)
    for h in range(num_heads):
        lo = h * head_dim
        qh = q3[:, :, lo:lo + head_dim]                   # (bs, Lq, Dh) bf16
        kh = kv3[:, :, lo:lo + head_dim]                  # (bs, Lk, Dh) bf16
        vh = kv3[:, :, E + lo:E + lo + head_dim]          # (bs, Lk, Dh) bf16

        s = jnp.einsum('bqd,bkd->bqk', qh, kh,
                       preferred_element_type=jnp.float32)  # (bs, Lq, Lk) f32
        s = s - jnp.max(s, axis=-1, keepdims=True)
        e = jnp.exp(s)
        # divide -> EUP approximate reciprocal + multiply (frees VALU slots)
        r = pl.reciprocal(jnp.sum(e, axis=-1, keepdims=True), approx=True)
        # mean over queries of the row-softmax BEFORE the P@V matmul.
        p_pooled = jnp.sum(e * r, axis=1, keepdims=True) * inv_lq  # (bs,1,Lk)

        # Keep pooled probabilities in f32 through P@V (tiny matmul; avoids
        # bf16 rounding of many ~1/Lk-sized terms for large Lk).
        ctx_h = jnp.einsum('bqk,bkd->bqd', p_pooled, vh,
                           preferred_element_type=jnp.float32)     # (bs,1,Dh)
        ctx_h = ctx_h.reshape(bs, head_dim)
        # ctx @ Wo == sum_h ctx_h @ Wo[h*Dh:(h+1)*Dh, :]   (sublane-axis slice)
        pooled_proj = pooled_proj + jnp.dot(
            ctx_h.astype(jnp.bfloat16), wo[lo:lo + head_dim, :],
            preferred_element_type=jnp.float32)                    # (bs, E)

    pooled = pooled_proj + bo_ref[...]                    # (bs, E) f32

    # Expert FC + gating (element-wise math in f32; exact division so the
    # returned alpha rows normalize exactly).
    logits = (jnp.dot(pooled.astype(jnp.bfloat16), fcw_ref[...],
                      preferred_element_type=jnp.float32)
              + fcb_ref[...])                             # (bs, K)

    if gating == 'softmax':
        z = logits - jnp.max(logits, axis=-1, keepdims=True)
        ez = jnp.exp(z)
        alpha = ez / jnp.sum(ez, axis=-1, keepdims=True)
    else:  # 'sigmoid' (module default)
        alpha = jax.nn.sigmoid(logits)
        if normalize_sigmoid:
            alpha = alpha / (jnp.sum(alpha, axis=-1, keepdims=True) + 1e-6)

    alpha_ref[...] = alpha.astype(alpha_ref.dtype)


def _vmem_estimate_bytes(bs, Lq, Lk, E, K):
    """Rough per-step VMEM footprint (double-buffered inputs + intermediates)."""
    tokens = 2 * bs * (Lq + Lk) * E * 2                    # 2x-buffered bf16 tiles
    weights = 2 * (4 * E * E + E * K) * 2                  # 2x-buffered bf16 weights
    biases = 2 * (4 * E + 2 * K) * 4
    inter = bs * (Lq * E + 2 * Lk * E) * (4 + 2)           # f32 + bf16 q / kv
    inter += 2 * bs * Lq * Lk * 4                          # live score/exp tile
    inter += bs * (2 * E + Lk + K) * 4                     # pooled rows / logits
    out = 2 * bs * K * 4
    return tokens + weights + biases + inter + out


def _choose_batch_block(B, Lq, Lk, E, K, budget_bytes=40 * 1024 * 1024):
    """Pick bs: fill the MXU M dim, fit a v7x-safe VMEM budget, keep >=2 steps."""
    bs = max(1, -(-512 // max(Lq, 1)))        # ~512 rows fills v5e..v7x MXU M
    if B >= 2:
        bs = min(bs, -(-B // 2))              # >=2 grid steps for v7x's 2 TCs
    bs = max(1, min(bs, B))
    while bs > 1 and _vmem_estimate_bytes(bs, Lq, Lk, E, K) > budget_bytes:
        bs //= 2
    return max(bs, 1)


def multihead_cross_attention_router(prompt_tokens, vit_tokens, params, *,
                                     num_heads=1, gating='sigmoid',
                                     normalize_sigmoid=True):
    """prompt_tokens: (B, Lq, E)  vit_tokens: (B, Lk, E)  ->  alpha: (B, K)."""
    if gating not in ('softmax', 'sigmoid'):
        raise ValueError(f'Unknown gating mode {gating}')
    B, Lq, E = prompt_tokens.shape
    _, Lk, _ = vit_tokens.shape
    K = params['fc_w'].shape[1]
    assert E % num_heads == 0, "embed_dim must be divisible by num_heads"

    bf16, f32 = jnp.bfloat16, jnp.float32
    head_dim = E // num_heads
    scale = 1.0 / math.sqrt(head_dim)

    # bf16 matmul inputs (halves HBM traffic); biases stay f32.  The softmax
    # scale is folded into the Q projection weights/bias (exact).
    prompt_bf = prompt_tokens.astype(bf16)
    vit_bf = vit_tokens.astype(bf16)
    wq = (params['wq'] * scale).astype(bf16)
    wkv = jnp.concatenate([params['wk'], params['wv']], axis=1).astype(bf16)
    wo = params['wo'].astype(bf16)
    fc_w = params['fc_w'].astype(bf16)
    bq = (params['bq'] * scale).astype(f32)
    bkv = jnp.concatenate([params['bk'], params['bv']], axis=1).astype(f32)
    bo = params['bo'].astype(f32)
    fc_b = params['fc_b'].astype(f32)

    # Batch blocking (+ zero padding so bs divides the batch; padded rows are
    # computed independently and dropped, so they cannot affect valid rows).
    bs = _choose_batch_block(B, Lq, Lk, E, K)
    num_blocks = pl.cdiv(B, bs)
    B_pad = num_blocks * bs
    if B_pad != B:
        pad = ((0, B_pad - B), (0, 0), (0, 0))
        prompt_bf = jnp.pad(prompt_bf, pad)
        vit_bf = jnp.pad(vit_bf, pad)

    est = _vmem_estimate_bytes(bs, Lq, Lk, E, K)
    vmem_limit = int(min(max(2 * est, 32 * 1024 * 1024), 60 * 1024 * 1024))

    kernel = functools.partial(_router_kernel,
                               num_heads=num_heads,
                               gating=gating,
                               normalize_sigmoid=normalize_sigmoid)

    def full_spec(shape):
        n = len(shape)
        return pl.BlockSpec(shape, lambda i: (0,) * n)

    cost = pl.CostEstimate(
        flops=2 * B * (Lq * E * E + Lk * E * 2 * E + Lq * Lk * E
                       + Lk * E + E * E + E * K),
        transcendentals=B * num_heads * Lq * Lk + B * K,
        bytes_accessed=(B * (Lq + Lk) * E * 2 + (4 * E * E + E * K) * 2
                        + (4 * E + 2 * K) * 4 + B * K * 4),
    )

    alpha = pl.pallas_call(
        kernel,
        grid=(num_blocks,),
        in_specs=[
            pl.BlockSpec((bs, Lq, E), lambda i: (i, 0, 0)),   # prompt block
            pl.BlockSpec((bs, Lk, E), lambda i: (i, 0, 0)),   # vit block
            full_spec((E, E)),          # wq (scale folded in)
            full_spec((E, 2 * E)),      # wkv (fused K|V)
            full_spec((E, E)),          # wo
            full_spec((1, E)),          # bq (scale folded in)
            full_spec((1, 2 * E)),      # bkv
            full_spec((1, E)),          # bo
            full_spec((E, K)),          # fc_w
            full_spec((1, K)),          # fc_b
        ],
        out_specs=pl.BlockSpec((None, bs, K), lambda i: (i, 0, 0)),
        out_shape=jax.ShapeDtypeStruct((num_blocks, bs, K), jnp.float32),
        compiler_params=pltpu.CompilerParams(
            dimension_semantics=("parallel",),   # batch blocks shard across TCs
            vmem_limit_bytes=vmem_limit),
        cost_estimate=cost,
    )(prompt_bf, vit_bf, wq, wkv, wo, bq, bkv, bo, fc_w, fc_b)

    return alpha.reshape(B_pad, K)[:B]


def _reference(prompt, vit, params, *, num_heads, gating, normalize_sigmoid):
    """Pure-JAX f32 reference mirroring torch.nn.MultiheadAttention + fc + gate."""
    B, Lq, E = prompt.shape
    Dh = E // num_heads
    q = prompt @ params['wq'] + params['bq']
    k = vit @ params['wk'] + params['bk']
    v = vit @ params['wv'] + params['bv']
    outs = []
    for h in range(num_heads):
        lo = h * Dh
        s = jnp.einsum('bqd,bkd->bqk', q[..., lo:lo + Dh], k[..., lo:lo + Dh])
        s = s / math.sqrt(Dh)
        p = jax.nn.softmax(s, axis=-1)
        outs.append(jnp.einsum('bqk,bkd->bqd', p, v[..., lo:lo + Dh]))
    ctx = outs[0] if num_heads == 1 else jnp.concatenate(outs, axis=-1)
    attn_out = ctx @ params['wo'] + params['bo']
    pooled = attn_out.mean(axis=1)
    logits = pooled @ params['fc_w'] + params['fc_b']
    if gating == 'softmax':
        return jax.nn.softmax(logits, axis=-1)
    alpha = jax.nn.sigmoid(logits)
    if normalize_sigmoid:
        alpha = alpha / (alpha.sum(axis=-1, keepdims=True) + 1e-6)
    return alpha


if __name__ == "__main__":
    # Small shapes consistent with the module's forward (embed_dim shrunk).
    # B=3 exercises batch blocking (bs=2), batch padding, and a 2-step grid.
    B, Lq, Lk, E, K = 3, 8, 16, 32, 3

    key = jax.random.PRNGKey(0)
    ks = jax.random.split(key, 12)
    w = 0.05
    f32 = jnp.float32

    prompt_tokens = jax.random.normal(ks[0], (B, Lq, E), f32)
    vit_tokens = jax.random.normal(ks[1], (B, Lk, E), f32)

    # Deterministic synthetic parameters (shapes follow nn.MultiheadAttention
    # in_proj/out_proj split and nn.Linear(E, K)); stored as (in, out).
    params = {
        'wq': w * jax.random.normal(ks[2], (E, E), f32),
        'wk': w * jax.random.normal(ks[3], (E, E), f32),
        'wv': w * jax.random.normal(ks[4], (E, E), f32),
        'wo': w * jax.random.normal(ks[5], (E, E), f32),
        'bq': w * jax.random.normal(ks[6], (1, E), f32),
        'bk': w * jax.random.normal(ks[7], (1, E), f32),
        'bv': w * jax.random.normal(ks[8], (1, E), f32),
        'bo': w * jax.random.normal(ks[9], (1, E), f32),
        'fc_w': w * jax.random.normal(ks[10], (E, K), f32),
        'fc_b': w * jax.random.normal(ks[11], (1, K), f32),
    }

    configs = [
        # module __init__ defaults
        dict(num_heads=1, gating='sigmoid', normalize_sigmoid=True),
        # exercises the multi-head loop and the softmax gating branch
        dict(num_heads=4, gating='softmax', normalize_sigmoid=True),
    ]
    for cfg in configs:
        alpha = multihead_cross_attention_router(prompt_tokens, vit_tokens,
                                                 params, **cfg)
        alpha = jax.block_until_ready(alpha)
        ref = _reference(prompt_tokens, vit_tokens, params, **cfg)
        assert alpha.shape == (B, K)
        # bf16 matmul inputs + approximate EUP reciprocal in the attention
        # softmax vs. pure-f32 reference -> loose tolerance.
        assert jnp.allclose(alpha, ref, atol=2e-2, rtol=2e-2), (
            f"mismatch for {cfg}: max abs err "
            f"{float(jnp.max(jnp.abs(alpha - ref)))}")
    print("KERNEL_OK")
</pallas_src>

<mosaic_0001>
module attributes {stable_mosaic.version = 11 : i64} {
  func.func @_router_kernel(%arg0: i32, %arg1: memref<2x8x32xbf16, #tpu.memory_space<vmem>>, %arg2: memref<2x16x32xbf16, #tpu.memory_space<vmem>>, %arg3: memref<32x32xbf16, #tpu.memory_space<vmem>>, %arg4: memref<32x64xbf16, #tpu.memory_space<vmem>>, %arg5: memref<32x32xbf16, #tpu.memory_space<vmem>>, %arg6: memref<1x32xf32, #tpu.memory_space<vmem>>, %arg7: memref<1x64xf32, #tpu.memory_space<vmem>>, %arg8: memref<1x32xf32, #tpu.memory_space<vmem>>, %arg9: memref<32x3xbf16, #tpu.memory_space<vmem>>, %arg10: memref<1x3xf32, #tpu.memory_space<vmem>>, %arg11: memref<1x2x3xf32, #tpu.memory_space<vmem>>) attributes {dimension_semantics = [#tpu.dimension_semantics<parallel>], iteration_bounds = array<i64: 2>, scalar_prefetch = 0 : i64, scratch_operands = 0 : i64, tpu.core_type = #tpu.core_type<tc>, window_params = [{transform_indices = @transform_0, window_bounds = array<i64: 2, 8, 32>}, {transform_indices = @transform_1, window_bounds = array<i64: 2, 16, 32>}, {pipeline_mode = #tpu.pipeline_mode<synchronous>, transform_indices = @transform_2, window_bounds = array<i64: 32, 32>}, {pipeline_mode = #tpu.pipeline_mode<synchronous>, transform_indices = @transform_3, window_bounds = array<i64: 32, 64>}, {pipeline_mode = #tpu.pipeline_mode<synchronous>, transform_indices = @transform_4, window_bounds = array<i64: 32, 32>}, {pipeline_mode = #tpu.pipeline_mode<synchronous>, transform_indices = @transform_5, window_bounds = array<i64: 1, 32>}, {pipeline_mode = #tpu.pipeline_mode<synchronous>, transform_indices = @transform_6, window_bounds = array<i64: 1, 64>}, {pipeline_mode = #tpu.pipeline_mode<synchronous>, transform_indices = @transform_7, window_bounds = array<i64: 1, 32>}, {pipeline_mode = #tpu.pipeline_mode<synchronous>, transform_indices = @transform_8, window_bounds = array<i64: 32, 3>}, {pipeline_mode = #tpu.pipeline_mode<synchronous>, transform_indices = @transform_9, window_bounds = array<i64: 1, 3>}, {transform_indices = @transform_10, window_bounds = array<i64: 1, 2, 3>}]} {
    %c0 = arith.constant 0 : index
    %c0_0 = arith.constant 0 : index
    %c0_1 = arith.constant 0 : index
    %0 = vector.load %arg1[%c0, %c0_0, %c0_1] : memref<2x8x32xbf16, #tpu.memory_space<vmem>>, vector<2x8x32xbf16>
    %1 = vector.shape_cast %0 : vector<2x8x32xbf16> to vector<16x32xbf16>
    %c0_2 = arith.constant 0 : index
    %c0_3 = arith.constant 0 : index
    %c0_4 = arith.constant 0 : index
    %2 = vector.load %arg2[%c0_2, %c0_3, %c0_4] : memref<2x16x32xbf16, #tpu.memory_space<vmem>>, vector<2x16x32xbf16>
    %3 = vector.shape_cast %2 : vector<2x16x32xbf16> to vector<32x32xbf16>
    %c0_5 = arith.constant 0 : index
    %c0_6 = arith.constant 0 : index
    %4 = vector.load %arg3[%c0_5, %c0_6] : memref<32x32xbf16, #tpu.memory_space<vmem>>, vector<32x32xbf16>
    %cst = arith.constant dense<0.000000e+00> : vector<16x32xf32>
    %5 = tpu.matmul %1, %4, %cst {dimension_numbers = #tpu.dot_dimension_numbers<[1], [0], [0], [1], [0, 0, 1, 1], [], []>} : vector<16x32xbf16>, vector<32x32xbf16>, vector<16x32xf32> -> vector<16x32xf32>
    %c0_7 = arith.constant 0 : index
    %c0_8 = arith.constant 0 : index
    %6 = vector.load %arg6[%c0_7, %c0_8] : memref<1x32xf32, #tpu.memory_space<vmem>>, vector<1x32xf32>
    %7 = vector.broadcast %6 : vector<1x32xf32> to vector<16x32xf32>
    %8 = arith.addf %5, %7 : vector<16x32xf32>
    %c0_9 = arith.constant 0 : index
    %c0_10 = arith.constant 0 : index
    %9 = vector.load %arg4[%c0_9, %c0_10] : memref<32x64xbf16, #tpu.memory_space<vmem>>, vector<32x64xbf16>
    %cst_11 = arith.constant dense<0.000000e+00> : vector<32x64xf32>
    %10 = tpu.matmul %3, %9, %cst_11 {dimension_numbers = #tpu.dot_dimension_numbers<[1], [0], [0], [1], [0, 0, 1, 1], [], []>} : vector<32x32xbf16>, vector<32x64xbf16>, vector<32x64xf32> -> vector<32x64xf32>
    %c0_12 = arith.constant 0 : index
    %c0_13 = arith.constant 0 : index
    %11 = vector.load %arg7[%c0_12, %c0_13] : memref<1x64xf32, #tpu.memory_space<vmem>>, vector<1x64xf32>
    %12 = vector.broadcast %11 : vector<1x64xf32> to vector<32x64xf32>
    %13 = arith.addf %10, %12 : vector<32x64xf32>
    %14 = arith.truncf %8 : vector<16x32xf32> to vector<16x32xbf16>
    %15 = vector.shape_cast %14 : vector<16x32xbf16> to vector<2x8x32xbf16>
    %16 = arith.truncf %13 : vector<32x64xf32> to vector<32x64xbf16>
    %17 = vector.shape_cast %16 : vector<32x64xbf16> to vector<2x16x64xbf16>
    %c0_14 = arith.constant 0 : index
    %c0_15 = arith.constant 0 : index
    %18 = vector.load %arg5[%c0_14, %c0_15] : memref<32x32xbf16, #tpu.memory_space<vmem>>, vector<32x32xbf16>
    %cst_16 = arith.constant 0.000000e+00 : f32
    %19 = vector.broadcast %cst_16 : f32 to vector<2x32xf32>
    %20 = vector.extract_strided_slice %17 {offsets = [0, 0, 0], sizes = [2, 16, 32], strides = [1, 1, 1]} : vector<2x16x64xbf16> to vector<2x16x32xbf16>
    %21 = vector.extract_strided_slice %17 {offsets = [0, 0, 32], sizes = [2, 16, 32], strides = [1, 1, 1]} : vector<2x16x64xbf16> to vector<2x16x32xbf16>
    "tpu.trace_start"() <{level = 10 : i32, message = "bqd,bkd->bqk"}> : () -> ()
    %cst_17 = arith.constant dense<0.000000e+00> : vector<2x8x16xf32>
    %22 = tpu.matmul %15, %20, %cst_17 {dimension_numbers = #tpu.dot_dimension_numbers<[2], [2], [1], [1], [0, 0, 0, 1, 1, 1], [0], [0]>} : vector<2x8x32xbf16>, vector<2x16x32xbf16>, vector<2x8x16xf32> -> vector<2x8x16xf32>
    "tpu.trace_stop"() : () -> ()
    %cst_18 = arith.constant dense<0xFF800000> : vector<2x8xf32>
    %23 = vector.multi_reduction <maximumf>, %22, %cst_18 [2] : vector<2x8x16xf32> to vector<2x8xf32>
    %24 = vector.shape_cast %23 : vector<2x8xf32> to vector<2x8x1xf32>
    %25 = vector.broadcast %24 : vector<2x8x1xf32> to vector<2x8x16xf32>
    %26 = arith.subf %22, %25 : vector<2x8x16xf32>
    %27 = math.exp %26 : vector<2x8x16xf32>
    %cst_19 = arith.constant dense<0.000000e+00> : vector<2x8xf32>
    %28 = vector.multi_reduction <add>, %27, %cst_19 [2] : vector<2x8x16xf32> to vector<2x8xf32>
    %29 = vector.shape_cast %28 : vector<2x8xf32> to vector<2x8x1xf32>
    %30 = tpu.reciprocal %29 {approx = true} : vector<2x8x1xf32> -> vector<2x8x1xf32>
    %31 = vector.broadcast %30 : vector<2x8x1xf32> to vector<2x8x16xf32>
    %32 = arith.mulf %27, %31 : vector<2x8x16xf32>
    %cst_20 = arith.constant dense<0.000000e+00> : vector<2x16xf32>
    %33 = vector.multi_reduction <add>, %32, %cst_20 [1] : vector<2x8x16xf32> to vector<2x16xf32>
    %34 = vector.shape_cast %33 : vector<2x16xf32> to vector<2x1x16xf32>
    %cst_21 = arith.constant 1.250000e-01 : f32
    %35 = vector.broadcast %cst_21 : f32 to vector<2x1x16xf32>
    %36 = arith.mulf %34, %35 : vector<2x1x16xf32>
    "tpu.trace_start"() <{level = 10 : i32, message = "bqk,bkd->bqd"}> : () -> ()
    %cst_22 = arith.constant dense<0.000000e+00> : vector<2x1x32xf32>
    %37 = tpu.matmul %36, %21, %cst_22 {dimension_numbers = #tpu.dot_dimension_numbers<[2], [1], [1], [2], [0, 0, 0, 1, 1, 2], [0], [0]>} : vector<2x1x16xf32>, vector<2x16x32xbf16>, vector<2x1x32xf32> -> vector<2x1x32xf32>
    "tpu.trace_stop"() : () -> ()
    %38 = vector.shape_cast %37 : vector<2x1x32xf32> to vector<2x32xf32>
    %39 = arith.truncf %38 : vector<2x32xf32> to vector<2x32xbf16>
    %cst_23 = arith.constant dense<0.000000e+00> : vector<2x32xf32>
    %40 = tpu.matmul %39, %18, %cst_23 {dimension_numbers = #tpu.dot_dimension_numbers<[1], [0], [0], [1], [0, 0, 1, 1], [], []>} : vector<2x32xbf16>, vector<32x32xbf16>, vector<2x32xf32> -> vector<2x32xf32>
    %41 = arith.addf %19, %40 : vector<2x32xf32>
    %c0_24 = arith.constant 0 : index
    %c0_25 = arith.constant 0 : index
    %42 = vector.load %arg8[%c0_24, %c0_25] : memref<1x32xf32, #tpu.memory_space<vmem>>, vector<1x32xf32>
    %43 = vector.broadcast %42 : vector<1x32xf32> to vector<2x32xf32>
    %44 = arith.addf %41, %43 : vector<2x32xf32>
    %45 = arith.truncf %44 : vector<2x32xf32> to vector<2x32xbf16>
    %c0_26 = arith.constant 0 : index
    %c0_27 = arith.constant 0 : index
    %46 = vector.load %arg9[%c0_26, %c0_27] : memref<32x3xbf16, #tpu.memory_space<vmem>>, vector<32x3xbf16>
    %cst_28 = arith.constant dense<0.000000e+00> : vector<2x3xf32>
    %47 = tpu.matmul %45, %46, %cst_28 {dimension_numbers = #tpu.dot_dimension_numbers<[1], [0], [0], [1], [0, 0, 1, 1], [], []>} : vector<2x32xbf16>, vector<32x3xbf16>, vector<2x3xf32> -> vector<2x3xf32>
    %c0_29 = arith.constant 0 : index
    %c0_30 = arith.constant 0 : index
    %48 = vector.load %arg10[%c0_29, %c0_30] : memref<1x3xf32, #tpu.memory_space<vmem>>, vector<1x3xf32>
    %49 = vector.broadcast %48 : vector<1x3xf32> to vector<2x3xf32>
    %50 = arith.addf %47, %49 : vector<2x3xf32>
    %51 = arith.negf %50 : vector<2x3xf32>
    %52 = math.exp %51 : vector<2x3xf32>
    %cst_31 = arith.constant 1.000000e+00 : f32
    %53 = vector.broadcast %cst_31 : f32 to vector<2x3xf32>
    %54 = arith.addf %53, %52 : vector<2x3xf32>
    %55 = arith.divf %53, %54 : vector<2x3xf32>
    %cst_32 = arith.constant dense<0.000000e+00> : vector<2xf32>
    %56 = vector.multi_reduction <add>, %55, %cst_32 [1] : vector<2x3xf32> to vector<2xf32>
    %57 = vector.shape_cast %56 : vector<2xf32> to vector<2x1xf32>
    %cst_33 = arith.constant 9.99999997E-7 : f32
    %58 = vector.broadcast %cst_33 : f32 to vector<2x1xf32>
    %59 = arith.addf %57, %58 : vector<2x1xf32>
    %60 = vector.broadcast %59 : vector<2x1xf32> to vector<2x3xf32>
    %61 = arith.divf %55, %60 : vector<2x3xf32>
    %c0_34 = arith.constant 0 : index
    %c0_35 = arith.constant 0 : index
    %c0_36 = arith.constant 0 : index
    %62 = vector.load %arg11[%c0_34, %c0_35, %c0_36] : memref<1x2x3xf32, #tpu.memory_space<vmem>>, vector<1x2x3xf32>
    %63 = vector.shape_cast %62 : vector<1x2x3xf32> to vector<2x3xf32>
    %64 = vector.shape_cast %61 : vector<2x3xf32> to vector<1x2x3xf32>
    tpu.vector_store %arg11[%c0_34, %c0_35, %c0_36], %64 {strides = array<i32>} : memref<1x2x3xf32, #tpu.memory_space<vmem>>, vector<1x2x3xf32>,
    return
  }
  func.func @transform_0(%arg0: i32) -> (i32, i32, i32) {
    %c0_i32 = arith.constant 0 : i32
    %c0_i32_0 = arith.constant 0 : i32
    %c0_i32_1 = arith.constant 0 : i32
    return %arg0, %c0_i32, %c0_i32_0 : i32, i32, i32
  }
  func.func @transform_1(%arg0: i32) -> (i32, i32, i32) {
    %c0_i32 = arith.constant 0 : i32
    %c0_i32_0 = arith.constant 0 : i32
    %c0_i32_1 = arith.constant 0 : i32
    return %arg0, %c0_i32, %c0_i32_0 : i32, i32, i32
  }
  func.func @transform_2(%arg0: i32) -> (i32, i32) {
    %c0_i32 = arith.constant 0 : i32
    %c0_i32_0 = arith.constant 0 : i32
    %c0_i32_1 = arith.constant 0 : i32
    return %c0_i32, %c0_i32_0 : i32, i32
  }
  func.func @transform_3(%arg0: i32) -> (i32, i32) {
    %c0_i32 = arith.constant 0 : i32
    %c0_i32_0 = arith.constant 0 : i32
    %c0_i32_1 = arith.constant 0 : i32
    return %c0_i32, %c0_i32_0 : i32, i32
  }
  func.func @transform_4(%arg0: i32) -> (i32, i32) {
    %c0_i32 = arith.constant 0 : i32
    %c0_i32_0 = arith.constant 0 : i32
    %c0_i32_1 = arith.constant 0 : i32
    return %c0_i32, %c0_i32_0 : i32, i32
  }
  func.func @transform_5(%arg0: i32) -> (i32, i32) {
    %c0_i32 = arith.constant 0 : i32
    %c0_i32_0 = arith.constant 0 : i32
    %c0_i32_1 = arith.constant 0 : i32
    return %c0_i32, %c0_i32_0 : i32, i32
  }
  func.func @transform_6(%arg0: i32) -> (i32, i32) {
    %c0_i32 = arith.constant 0 : i32
    %c0_i32_0 = arith.constant 0 : i32
    %c0_i32_1 = arith.constant 0 : i32
    return %c0_i32, %c0_i32_0 : i32, i32
  }
  func.func @transform_7(%arg0: i32) -> (i32, i32) {
    %c0_i32 = arith.constant 0 : i32
    %c0_i32_0 = arith.constant 0 : i32
    %c0_i32_1 = arith.constant 0 : i32
    return %c0_i32, %c0_i32_0 : i32, i32
  }
  func.func @transform_8(%arg0: i32) -> (i32, i32) {
    %c0_i32 = arith.constant 0 : i32
    %c0_i32_0 = arith.constant 0 : i32
    %c0_i32_1 = arith.constant 0 : i32
    return %c0_i32, %c0_i32_0 : i32, i32
  }
  func.func @transform_9(%arg0: i32) -> (i32, i32) {
    %c0_i32 = arith.constant 0 : i32
    %c0_i32_0 = arith.constant 0 : i32
    %c0_i32_1 = arith.constant 0 : i32
    return %c0_i32, %c0_i32_0 : i32, i32
  }
  func.func @transform_10(%arg0: i32) -> (i32, i32, i32) {
    %c0_i32 = arith.constant 0 : i32
    %c0_i32_0 = arith.constant 0 : i32
    %c0_i32_1 = arith.constant 0 : i32
    return %arg0, %c0_i32, %c0_i32_0 : i32, i32, i32
  }
}

</mosaic_0001>

<llo_original>
// kernel: tpu_custom_call.1
$region0: #{tpu_custom_call.1}
  #allocation0 [shape = 'u32[]', space=smem, size = 0x4, offset = 0x4, fixed_abs, tag = 'smem constant byte address 0x4 - core index']
  #allocation1 [shape = 'u32[72,128]{1,0:T(1,128)}', space=vmem, size = 0x9000, scoped, tag = 'internal scratch']
  %s0 = inlined_call_operand.vmem [shape: bf16[4,8,32], index: 0, kind: input, shape index: {}]
  %s1 = inlined_call_operand.hbm [shape: bf16[4,16,32], index: 1, kind: input, shape index: {}]
  %s2 = inlined_call_operand.hbm [shape: bf16[32,32], index: 2, kind: input, shape index: {}]
  %s3 = inlined_call_operand.hbm [shape: bf16[32,64], index: 3, kind: input, shape index: {}]
  %s4 = inlined_call_operand.hbm [shape: bf16[32,32], index: 4, kind: input, shape index: {}]
  %s5 = inlined_call_operand.vmem [shape: f32[1,32], index: 5, kind: input, shape index: {}]
  %s6 = inlined_call_operand.vmem [shape: f32[1,64], index: 6, kind: input, shape index: {}]
  %s7 = inlined_call_operand.vmem [shape: f32[1,32], index: 7, kind: input, shape index: {}]
  %s8 = inlined_call_operand.vmem [shape: bf16[32,3], index: 8, kind: input, shape index: {}]
  %s9 = inlined_call_operand.vmem [shape: f32[1,3], index: 9, kind: input, shape index: {}]
  %s10 = inlined_call_operand.hbm [shape: f32[2,2,3], index: 10, kind: output, shape index: {}]
  %s11 = sld [smem:[#allocation0]]
  $region89: #{tpu_custom_call.1} parent=0
    _
  %s13 = ssub.s32 1, %s11
  %s14 = scalar_select 0, %s13, %s11
  $region1: #{tpu_custom_call.1} parent=0
    #allocation2 [shape = 'u8[16384]{0}', space=vmem, size = 0x4000, scoped, tag = 'input window, operand 1']
    #allocation3 [shape = 's32[2]{0}', space=sflag, size = 0x8, scoped, tag = 'scoped memory for tpu_custom_call.1']
    #allocation4 [shape = 's32[2]{0}', space=sflag, size = 0x8, scoped, tag = 'scoped memory for tpu_custom_call.1']
    #allocation5 [shape = 'u8[8192]{0}', space=vmem, size = 0x2000, scoped, tag = 'input window, operand 2, single buffered']
    #allocation6 [shape = 's32[1]{0}', space=sflag, size = 0x4, scoped, tag = 'scoped memory for tpu_custom_call.1']
    #allocation7 [shape = 'u8[8192]{0}', space=vmem, size = 0x2000, scoped, tag = 'input window, operand 3, single buffered']
    #allocation8 [shape = 'u8[8192]{0}', space=vmem, size = 0x2000, scoped, tag = 'input window, operand 4, single buffered']
    #allocation9 [shape = 's32[1]{0}', space=sflag, size = 0x4, scoped, tag = 'scoped memory for tpu_custom_call.1']
    #allocation10 [shape = 'u8[2048]{0}', space=vmem, size = 0x800, scoped, tag = 'output window, operand 0']
    %15 = vsyncpa [#allocation3], 0
    %s16 = scalar_lea.sflag [#allocation3], 1
    %17 = vsyncpa %s16, 0
    %18 = vsyncpa [#allocation6], 0
    %19 = vsyncpa [#allocation9], 0
    %20 = vsyncpa [#allocation4], 0
    %s21 = scalar_lea.sflag [#allocation4], 1
    %22 = vsyncpa %s21, 0
    loop: start=0, step=1, limit=4
    $region2: #{tpu_custom_call.1} parent=1 // loop_pre_header
      _
    $region3: #{tpu_custom_call.1} parent=1 // loop_header
      %s24 = sphi 0, %s28
      %p25 = scmp.ge.s32.totalorder %s24, 4
      %s34 = sphi 0, %s36
      %s37 = sphi 0, %s34
      %s38 = sphi 0, %s37
      %s54 = sphi 0, %s38
      %s60 = sphi 0, %s62
      %s63 = sphi 0, %s60
      %s64 = sphi 0, %s63
      %s80 = sphi 0, %s64
      %s84 = sphi 0, %s84
      %s86 = sphi 0, %s84
      %s87 = sphi 0, %s86
      %s101 = sphi 0, %s87
      %s105 = sphi 0, %s105
      %s107 = sphi 0, %s105
      %s108 = sphi 0, %s107
      %s122 = sphi 0, %s108
      %s126 = sphi 0, %s126
      %s128 = sphi 0, %s126
      %s129 = sphi 0, %s128
      %s143 = sphi 0, %s129
      %s147 = sphi 0, %s147
      %s149 = sphi 0, %s147
      %s150 = sphi 0, %s149
      %s164 = sphi 0, %s150
      %s168 = sphi 0, %s168
      %s170 = sphi 0, %s168
      %s171 = sphi 0, %s170
      %s185 = sphi 0, %s171
      %s189 = sphi 0, %s189
      %s191 = sphi 0, %s189
      %s192 = sphi 0, %s191
      %s206 = sphi 0, %s192
      %s210 = sphi 0, %s210
      %s212 = sphi 0, %s210
      %s213 = sphi 0, %s212
      %s227 = sphi 0, %s213
      %s231 = sphi 0, %s231
      %s233 = sphi 0, %s231
      %s234 = sphi 0, %s233
      %s248 = sphi 0, %s234
      %s254 = sphi 0, %s256
      %s257 = sphi 0, %s254
      %s258 = sphi 0, %s257
      %s274 = sphi 0, %s258
    $region4: #{tpu_custom_call.1} parent=1 // loop_header_branch
      %27 = sbr.rel (%p25) target = $region8
    $region5: #{tpu_custom_call.1} parent=1 // loop_body
      %s29 = ssub.s32 %s24, 1
      %s30 = ssub.s32 %s24, 2
      %s31 = sadd.s32 %s24, 1
      %s32 = ssub.s32 %s24, %s31
      %p33 = scmp.eq.s32.totalorder %s32, 0
      %s35 = sadd.s32 %s34, 1
      %s36 = scalar_select %p33, %s34, %s35
      %p39 = pneg %p33
      %p40 = scmp.eq.s32.totalorder %s24, 1
      %p41 = por %p39, %p40
      %p42 = scmp.ne.s32.totalorder %s34, %s37
      %p43 = scmp.eq.s32.totalorder %s24, 0
      %p44 = por %p42, %p43
      %p45 = scmp.ne.s32.totalorder %s34, %s37
      %p46 = scmp.eq.s32.totalorder %s29, 1
      %p47 = por %p45, %p46
      %p48 = scmp.ne.s32.totalorder %s37, %s38
      %p49 = scmp.eq.s32.totalorder %s29, 0
      %p50 = por %p48, %p49
      %p51 = scmp.ne.s32.totalorder %s37, %s38
      %p52 = scmp.eq.s32.totalorder %s30, 1
      %p53 = por %p51, %p52
      %p55 = scmp.ne.s32.totalorder %s38, %s54
      %p56 = scmp.eq.s32.totalorder %s30, 0
      %p57 = por %p55, %p56
      %s58 = ssub.s32 %s24, %s31
      %p59 = scmp.eq.s32.totalorder %s58, 0
      %s61 = sadd.s32 %s60, 1
      %s62 = scalar_select %p59, %s60, %s61
      %p65 = pneg %p59
      %p66 = scmp.eq.s32.totalorder %s24, 1
      %p67 = por %p65, %p66
      %p68 = scmp.ne.s32.totalorder %s60, %s63
      %p69 = scmp.eq.s32.totalorder %s24, 0
      %p70 = por %p68, %p69
      %p71 = scmp.ne.s32.totalorder %s60, %s63
      %p72 = scmp.eq.s32.totalorder %s29, 1
      %p73 = por %p71, %p72
      %p74 = scmp.ne.s32.totalorder %s63, %s64
      %p75 = scmp.eq.s32.totalorder %s29, 0
      %p76 = por %p74, %p75
      %p77 = scmp.ne.s32.totalorder %s63, %s64
      %p78 = scmp.eq.s32.totalorder %s30, 1
      %p79 = por %p77, %p78
      %p81 = scmp.ne.s32.totalorder %s64, %s80
      %p82 = scmp.eq.s32.totalorder %s30, 0
      %p83 = por %p81, %p82
      %s85 = sadd.s32 %s84, 1
      %p88 = scmp.eq.s32.totalorder %s24, 1
      %p89 = scmp.ne.s32.totalorder %s84, %s86
      %p90 = scmp.eq.s32.totalorder %s24, 0
      %p91 = por %p89, %p90
      %p92 = scmp.ne.s32.totalorder %s84, %s86
      %p93 = scmp.eq.s32.totalorder %s29, 1
      %p94 = por %p92, %p93
      %p95 = scmp.ne.s32.totalorder %s86, %s87
      %p96 = scmp.eq.s32.totalorder %s29, 0
      %p97 = por %p95, %p96
      %p98 = scmp.ne.s32.totalorder %s86, %s87
      %p99 = scmp.eq.s32.totalorder %s30, 1
      %p100 = por %p98, %p99
      %p102 = scmp.ne.s32.totalorder %s87, %s101
      %p103 = scmp.eq.s32.totalorder %s30, 0
      %p104 = por %p102, %p103
      %s106 = sadd.s32 %s105, 1
      %p109 = scmp.eq.s32.totalorder %s24, 1
      %p110 = scmp.ne.s32.totalorder %s105, %s107
      %p111 = scmp.eq.s32.totalorder %s24, 0
      %p112 = por %p110, %p111
      %p113 = scmp.ne.s32.totalorder %s105, %s107
      %p114 = scmp.eq.s32.totalorder %s29, 1
      %p115 = por %p113, %p114
      %p116 = scmp.ne.s32.totalorder %s107, %s108
      %p117 = scmp.eq.s32.totalorder %s29, 0
      %p118 = por %p116, %p117
      %p119 = scmp.ne.s32.totalorder %s107, %s108
      %p120 = scmp.eq.s32.totalorder %s30, 1
      %p121 = por %p119, %p120
      %p123 = scmp.ne.s32.totalorder %s108, %s122
      %p124 = scmp.eq.s32.totalorder %s30, 0
      %p125 = por %p123, %p124
      %s127 = sadd.s32 %s126, 1
      %p130 = scmp.eq.s32.totalorder %s24, 1
      %p131 = scmp.ne.s32.totalorder %s126, %s128
      %p132 = scmp.eq.s32.totalorder %s24, 0
      %p133 = por %p131, %p132
      %p134 = scmp.ne.s32.totalorder %s126, %s128
      %p135 = scmp.eq.s32.totalorder %s29, 1
      %p136 = por %p134, %p135
      %p137 = scmp.ne.s32.totalorder %s128, %s129
      %p138 = scmp.eq.s32.totalorder %s29, 0
      %p139 = por %p137, %p138
      %p140 = scmp.ne.s32.totalorder %s128, %s129
      %p141 = scmp.eq.s32.totalorder %s30, 1
      %p142 = por %p140, %p141
      %p144 = scmp.ne.s32.totalorder %s129, %s143
      %p145 = scmp.eq.s32.totalorder %s30, 0
      %p146 = por %p144, %p145
      %s148 = sadd.s32 %s147, 1
      %p151 = scmp.eq.s32.totalorder %s24, 1
      %p152 = scmp.ne.s32.totalorder %s147, %s149
      %p153 = scmp.eq.s32.totalorder %s24, 0
      %p154 = por %p152, %p153
      %p155 = scmp.ne.s32.totalorder %s147, %s149
      %p156 = scmp.eq.s32.totalorder %s29, 1
      %p157 = por %p155, %p156
      %p158 = scmp.ne.s32.totalorder %s149, %s150
      %p159 = scmp.eq.s32.totalorder %s29, 0
      %p160 = por %p158, %p159
      %p161 = scmp.ne.s32.totalorder %s149, %s150
      %p162 = scmp.eq.s32.totalorder %s30, 1
      %p163 = por %p161, %p162
      %p165 = scmp.ne.s32.totalorder %s150, %s164
      %p166 = scmp.eq.s32.totalorder %s30, 0
      %p167 = por %p165, %p166
      %s169 = sadd.s32 %s168, 1
      %p172 = scmp.eq.s32.totalorder %s24, 1
      %p173 = scmp.ne.s32.totalorder %s168, %s170
      %p174 = scmp.eq.s32.totalorder %s24, 0
      %p175 = por %p173, %p174
      %p176 = scmp.ne.s32.totalorder %s168, %s170
      %p177 = scmp.eq.s32.totalorder %s29, 1
      %p178 = por %p176, %p177
      %p179 = scmp.ne.s32.totalorder %s170, %s171
      %p180 = scmp.eq.s32.totalorder %s29, 0
      %p181 = por %p179, %p180
      %p182 = scmp.ne.s32.totalorder %s170, %s171
      %p183 = scmp.eq.s32.totalorder %s30, 1
      %p184 = por %p182, %p183
      %p186 = scmp.ne.s32.totalorder %s171, %s185
      %p187 = scmp.eq.s32.totalorder %s30, 0
      %p188 = por %p186, %p187
      %s190 = sadd.s32 %s189, 1
      %p193 = scmp.eq.s32.totalorder %s24, 1
      %p194 = scmp.ne.s32.totalorder %s189, %s191
      %p195 = scmp.eq.s32.totalorder %s24, 0
      %p196 = por %p194, %p195
      %p197 = scmp.ne.s32.totalorder %s189, %s191
      %p198 = scmp.eq.s32.totalorder %s29, 1
      %p199 = por %p197, %p198
      %p200 = scmp.ne.s32.totalorder %s191, %s192
      %p201 = scmp.eq.s32.totalorder %s29, 0
      %p202 = por %p200, %p201
      %p203 = scmp.ne.s32.totalorder %s191, %s192
      %p204 = scmp.eq.s32.totalorder %s30, 1
      %p205 = por %p203, %p204
      %p207 = scmp.ne.s32.totalorder %s192, %s206
      %p208 = scmp.eq.s32.totalorder %s30, 0
      %p209 = por %p207, %p208
      %s211 = sadd.s32 %s210, 1
      %p214 = scmp.eq.s32.totalorder %s24, 1
      %p215 = scmp.ne.s32.totalorder %s210, %s212
      %p216 = scmp.eq.s32.totalorder %s24, 0
      %p217 = por %p215, %p216
      %p218 = scmp.ne.s32.totalorder %s210, %s212
      %p219 = scmp.eq.s32.totalorder %s29, 1
      %p220 = por %p218, %p219
      %p221 = scmp.ne.s32.totalorder %s212, %s213
      %p222 = scmp.eq.s32.totalorder %s29, 0
      %p223 = por %p221, %p222
      %p224 = scmp.ne.s32.totalorder %s212, %s213
      %p225 = scmp.eq.s32.totalorder %s30, 1
      %p226 = por %p224, %p225
      %p228 = scmp.ne.s32.totalorder %s213, %s227
      %p229 = scmp.eq.s32.totalorder %s30, 0
      %p230 = por %p228, %p229
      %s232 = sadd.s32 %s231, 1
      %p235 = scmp.eq.s32.totalorder %s24, 1
      %p236 = scmp.ne.s32.totalorder %s231, %s233
      %p237 = scmp.eq.s32.totalorder %s24, 0
      %p238 = por %p236, %p237
      %p239 = scmp.ne.s32.totalorder %s231, %s233
      %p240 = scmp.eq.s32.totalorder %s29, 1
      %p241 = por %p239, %p240
      %p242 = scmp.ne.s32.totalorder %s233, %s234
      %p243 = scmp.eq.s32.totalorder %s29, 0
      %p244 = por %p242, %p243
      %p245 = scmp.ne.s32.totalorder %s233, %s234
      %p246 = scmp.eq.s32.totalorder %s30, 1
      %p247 = por %p245, %p246
      %p249 = scmp.ne.s32.totalorder %s234, %s248
      %p250 = scmp.eq.s32.totalorder %s30, 0
      %p251 = por %p249, %p250
      %s252 = ssub.s32 %s24, %s31
      %p253 = scmp.eq.s32.totalorder %s252, 0
      %s255 = sadd.s32 %s254, 1
      %s256 = scalar_select %p253, %s254, %s255
      %p259 = pneg %p253
      %p260 = scmp.eq.s32.totalorder %s24, 1
      %p261 = por %p259, %p260
      %p262 = scmp.ne.s32.totalorder %s254, %s257
      %p263 = scmp.eq.s32.totalorder %s24, 0
      %p264 = por %p262, %p263
      %p265 = scmp.ne.s32.totalorder %s254, %s257
      %p266 = scmp.eq.s32.totalorder %s29, 1
      %p267 = por %p265, %p266
      %p268 = scmp.ne.s32.totalorder %s257, %s258
      %p269 = scmp.eq.s32.totalorder %s29, 0
      %p270 = por %p268, %p269
      %p271 = scmp.ne.s32.totalorder %s257, %s258
      %p272 = scmp.eq.s32.totalorder %s30, 1
      %p273 = por %p271, %p272
      %p275 = scmp.ne.s32.totalorder %s258, %s274
      %p276 = scmp.eq.s32.totalorder %s30, 0
      %p277 = por %p275, %p276
      %p278 = scmp.le.s32.totalorder 1, %s24
      %p279 = scmp.lt.s32.totalorder %s24, 3
      %p280 = pnand %p278, %p279
      %p281 = pneg %p280
      // Predicated region
      $region9: #{tpu_custom_call.1} parent=5 // pred_check
        _
      $region10: #{tpu_custom_call.1} parent=5 // pred_check_branch
        %283 = sbr.rel (%p280) target = $region12
      $region11: #{tpu_custom_call.1} parent=5 // pred_region
        %s284 = ssub.s32 %s24, 1
        // Predicated region
        $region13: #{tpu_custom_call.1} parent=11 // pred_check
          %p285 = pneg %p97
        $region14: #{tpu_custom_call.1} parent=11 // pred_check_branch
          %287 = sbr.rel (%p285) target = $region16
        $region15: #{tpu_custom_call.1} parent=11 // pred_region
          %289 = vsyncadd [#allocation6], 0
          %s290 = sshll.u32 %s2, 4
          %s291 = int_to_ptr.hbm [resolvable:$true] %s290
          %s292 = sshll.u32 [#allocation5], 4
          %s293 = int_to_ptr.vmem [resolvable:$true] %s292
          %298 = dma.hbm_to_vmem [thread:$0]  %s291, 256, %s293, [#allocation6], 64, 64, 4
        $region16: #{tpu_custom_call.1} parent=11 // pred_fallthru
          _
        // Predicated region
        $region17: #{tpu_custom_call.1} parent=11 // pred_check
          %p299 = pneg %p118
        $region18: #{tpu_custom_call.1} parent=11 // pred_check_branch
          %301 = sbr.rel (%p299) target = $region20
        $region19: #{tpu_custom_call.1} parent=11 // pred_region
          %303 = vsyncadd [#allocation6], 0
          %s304 = sshll.u32 %s3, 4
          %s305 = int_to_ptr.hbm [resolvable:$true] %s304
          %s306 = sshll.u32 [#allocation7], 4
          %s307 = int_to_ptr.vmem [resolvable:$true] %s306
          %312 = dma.hbm_to_vmem [thread:$0]  %s305, 256, %s307, [#allocation6], 64, 64, 4
        $region20: #{tpu_custom_call.1} parent=11 // pred_fallthru
          _
        // Predicated region
        $region21: #{tpu_custom_call.1} parent=11 // pred_check
          %p313 = pneg %p139
        $region22: #{tpu_custom_call.1} parent=11 // pred_check_branch
          %315 = sbr.rel (%p313) target = $region24
        $region23: #{tpu_custom_call.1} parent=11 // pred_region
          %317 = vsyncadd [#allocation9], 0
          %s318 = sshll.u32 %s4, 4
          %s319 = int_to_ptr.hbm [resolvable:$true] %s318
          %s320 = sshll.u32 [#allocation8], 4
          %s321 = int_to_ptr.vmem [resolvable:$true] %s320
          %326 = dma.hbm_to_vmem [thread:$0]  %s319, 256, %s321, [#allocation9], 64, 64, 4
        $region24: #{tpu_custom_call.1} parent=11 // pred_fallthru
          _
        // Predicated region
        $region25: #{tpu_custom_call.1} parent=11 // pred_check
          %p327 = pneg %p160
        $region26: #{tpu_custom_call.1} parent=11 // pred_check_branch
          %329 = sbr.rel (%p327) target = $region28
        $region27: #{tpu_custom_call.1} parent=11 // pred_region
          _
        $region28: #{tpu_custom_call.1} parent=11 // pred_fallthru
          _
        // Predicated region
        $region29: #{tpu_custom_call.1} parent=11 // pred_check
          %p330 = pneg %p181
        $region30: #{tpu_custom_call.1} parent=11 // pred_check_branch
          %332 = sbr.rel (%p330) target = $region32
        $region31: #{tpu_custom_call.1} parent=11 // pred_region
          _
        $region32: #{tpu_custom_call.1} parent=11 // pred_fallthru
          _
        // Predicated region
        $region33: #{tpu_custom_call.1} parent=11 // pred_check
          %p333 = pneg %p202
        $region34: #{tpu_custom_call.1} parent=11 // pred_check_branch
          %335 = sbr.rel (%p333) target = $region36
        $region35: #{tpu_custom_call.1} parent=11 // pred_region
          _
        $region36: #{tpu_custom_call.1} parent=11 // pred_fallthru
          _
        // Predicated region
        $region37: #{tpu_custom_call.1} parent=11 // pred_check
          %p336 = pneg %p223
        $region38: #{tpu_custom_call.1} parent=11 // pred_check_branch
          %338 = sbr.rel (%p336) target = $region40
        $region39: #{tpu_custom_call.1} parent=11 // pred_region
          _
        $region40: #{tpu_custom_call.1} parent=11 // pred_fallthru
          _
        // Predicated region
        $region41: #{tpu_custom_call.1} parent=11 // pred_check
          %p339 = pneg %p244
        $region42: #{tpu_custom_call.1} parent=11 // pred_check_branch
          %341 = sbr.rel (%p339) target = $region44
        $region43: #{tpu_custom_call.1} parent=11 // pred_region
          _
        $region44: #{tpu_custom_call.1} parent=11 // pred_fallthru
          _
      $region12: #{tpu_custom_call.1} parent=5 // pred_fallthru
        _
      %p342 = scmp.lt.s32.totalorder %s24, 2
      // Predicated region
      $region45: #{tpu_custom_call.1} parent=5 // pred_check
        %p343 = pneg %p342
      $region46: #{tpu_custom_call.1} parent=5 // pred_check_branch
        %345 = sbr.rel (%p343) target = $region48
      $region47: #{tpu_custom_call.1} parent=5 // pred_region
        // Predicated region
        $region49: #{tpu_custom_call.1} parent=47 // pred_check
          %p346 = pneg %p44
        $region50: #{tpu_custom_call.1} parent=47 // pred_check_branch
          %348 = sbr.rel (%p346) target = $region52
        $region51: #{tpu_custom_call.1} parent=47 // pred_region
          %s349 = smul.u32 2, %s24
          %p350 = scmp.lt.s32.totalorder %s349, 3
          %s351 = scalar_select %p350, %s349, 3
          %s352 = smul.addr %s351, 4
          %s353 = scalar_lea.vmem %s0, %s352
          %s354 = smul.u32 2, %s24
        $region52: #{tpu_custom_call.1} parent=47 // pred_fallthru
          _
        // Predicated region
        $region53: #{tpu_custom_call.1} parent=47 // pred_check
          %p355 = pneg %p70
        $region54: #{tpu_custom_call.1} parent=47 // pred_check_branch
          %357 = sbr.rel (%p355) target = $region56
        $region55: #{tpu_custom_call.1} parent=47 // pred_region
          %s358 = sand.u32 %s60, 1
          %s359 = scalar_lea.sflag [#allocation3], %s358
          %s360 = sand.u32 %s60, 1
          %s361 = smul.addr %s360, 16
          %s362 = scalar_lea.vmem [#allocation2], %s361
          %s363 = smul.u32 2, %s24
          %365 = vsyncadd %s359, 0
          %s366 = smul.addr %s363, 2
          %s367 = smul.addr %s366, 4
          %s368 = scalar_lea.hbm %s1, %s367
          %s369 = sshll.u32 %s368, 4
          %s370 = int_to_ptr.hbm [resolvable:$true] %s369
          %s371 = sshll.u32 %s362, 4
          %s372 = int_to_ptr.vmem [resolvable:$true] %s371
          %377 = dma.hbm_to_vmem [thread:$0]  %s370, 256, %s372, %s359, 64, 64, 4
        $region56: #{tpu_custom_call.1} parent=47 // pred_fallthru
          _
      $region48: #{tpu_custom_call.1} parent=5 // pred_fallthru
        _
      %p378 = scmp.le.s32.totalorder 1, %s24
      %p379 = scmp.lt.s32.totalorder %s24, 3
      %p380 = pnand %p378, %p379
      %p381 = pneg %p380
      // Predicated region
      $region57: #{tpu_custom_call.1} parent=5 // pred_check
        _
      $region58: #{tpu_custom_call.1} parent=5 // pred_check_branch
        %383 = sbr.rel (%p380) target = $region60
      $region59: #{tpu_custom_call.1} parent=5 // pred_region
        %s384 = ssub.s32 %s24, 1
        %s385 = sand.u32 %s63, 1
        %s386 = scalar_lea.sflag [#allocation3], %s385
        %s387 = sand.u32 %s63, 1
        %s388 = smul.addr %s387, 16
        %s389 = scalar_lea.vmem [#allocation2], %s388
        // Predicated region
        $region61: #{tpu_custom_call.1} parent=59 // pred_check
          %p390 = pneg %p76
        $region62: #{tpu_custom_call.1} parent=59 // pred_check_branch
          %392 = sbr.rel (%p390) target = $region64
        $region63: #{tpu_custom_call.1} parent=59 // pred_region
          %394 = dma.done %s386, 256
        $region64: #{tpu_custom_call.1} parent=59 // pred_fallthru
          _
        // Predicated region
        $region65: #{tpu_custom_call.1} parent=59 // pred_check
          %p395 = pneg %p97
        $region66: #{tpu_custom_call.1} parent=59 // pred_check_branch
          %397 = sbr.rel (%p395) target = $region68
        $region67: #{tpu_custom_call.1} parent=59 // pred_region
          %399 = dma.done [#allocation6], 256
        $region68: #{tpu_custom_call.1} parent=59 // pred_fallthru
          _
        // Predicated region
        $region69: #{tpu_custom_call.1} parent=59 // pred_check
          %p400 = pneg %p118
        $region70: #{tpu_custom_call.1} parent=59 // pred_check_branch
          %402 = sbr.rel (%p400) target = $region72
        $region71: #{tpu_custom_call.1} parent=59 // pred_region
          %404 = dma.done [#allocation6], 256
        $region72: #{tpu_custom_call.1} parent=59 // pred_fallthru
          _
        // Predicated region
        $region73: #{tpu_custom_call.1} parent=59 // pred_check
          %p405 = pneg %p139
        $region74: #{tpu_custom_call.1} parent=59 // pred_check_branch
          %407 = sbr.rel (%p405) target = $region76
        $region75: #{tpu_custom_call.1} parent=59 // pred_region
          %409 = dma.done [#allocation9], 256
        $region76: #{tpu_custom_call.1} parent=59 // pred_fallthru
          _
        %s410 = smul.u32 2, %s29
        %p411 = scmp.lt.s32.totalorder %s410, 3
        %s412 = scalar_select %p411, %s410, 3
        %s413 = smul.addr %s412, 4
        %s414 = scalar_lea.vmem %s0, %s413
        %p415 = pneg %p50
        %p416 = pneg %p47
        %s417 = sand.u32 %s63, 1
        %s418 = scalar_lea.sflag [#allocation3], %s417
        %s419 = sand.u32 %s63, 1
        %s420 = smul.addr %s419, 16
        %s421 = scalar_lea.vmem [#allocation2], %s420
        %p422 = pneg %p76
        %p423 = pneg %p73
        %p424 = pneg %p97
        %p425 = pneg %p94
        %p426 = pneg %p118
        %p427 = pneg %p115
        %p428 = pneg %p139
        %p429 = pneg %p136
        %p430 = pneg %p160
        %p431 = pneg %p157
        %p432 = pneg %p181
        %p433 = pneg %p178
        %p434 = pneg %p202
        %p435 = pneg %p199
        %p436 = pneg %p223
        %p437 = pneg %p220
        %p438 = pneg %p244
        %p439 = pneg %p241
        %p440 = pneg %p270
        %p441 = pneg %p267
        %s442 = sand.u32 %s257, 1
        %s443 = scalar_lea.sflag [#allocation4], %s442
        %s444 = sand.u32 %s257, 1
        %s445 = smul.addr %s444, 2
        %s446 = scalar_lea.vmem [#allocation10], %s445
        %s447 = smul.u32 2, %s29
        %p448 = scmp.lt.s32.totalorder %s447, 3
        %s449 = scalar_select %p448, %s447, 3
        %s450 = smul.addr %s449, 4
        %s451 = scalar_lea.vmem %s0, %s450
        %s452 = smul.u32 2, %s29
        %s453 = smul.u32 2, %s29
        %v455 = vld [vmem:[%s451] sm:$0xf]
        %v456 = vld [vmem:[%s451 + $0x4] sm:$0xf]
        %v457 = vld [vmem:[%s389] sm:$0xf]
        %v458 = vld [vmem:[%s389 + $0x4] sm:$0xf]
        %v459 = vld [vmem:[%s389 + $0x8] sm:$0xf]
        %v460 = vld [vmem:[%s389 + $0xc] sm:$0xf]
        %v461 = vld [vmem:[#allocation5] sm:$0xf]
        %v462 = vld [vmem:[#allocation5 + $0x4] sm:$0xf]
        %v463 = vld [vmem:[#allocation5 + $0x8] sm:$0xf]
        %v464 = vld [vmem:[#allocation5 + $0xc] sm:$0xf]
        %v465 = vld [vmem:[%s5] sm:$0x1]
        %v467 = vperm.slane %v465, 0
        %v471 = vunpack.c.l.b16 %v455
        %v472 = vunpack.c.l.b16 %v456
        %v473 = vpack.c.b16 %v472, %v471
        %v478 = vunpack.c.l.b16 %v461
        %v479 = vunpack.c.l.b16 %v462
        %v480 = vunpack.c.l.b16 %v463
        %v481 = vunpack.c.l.b16 %v464
        %v482 = vpack.c.b16 %v479, %v478
        %v483 = vpack.c.b16 %v481, %v480
        %vm486 = vcmask 261120
        %v488 = vsel %vm486, %v473, 0
        %490 = vmatpush.bf16.msra.mxu0 0
        %491 = vmatpush.bf16.msra.mxu0 0
        %492 = vmatpush.bf16.msra.mxu0 0
        %493 = vmatpush.bf16.msra.mxu0 0
        %494 = vmatpush.bf16.msra.mxu0 0
        %495 = vmatpush.bf16.msra.mxu0 0
        %496 = vmatpush.bf16.msra.mxu0 %v483
        %497 = vmatpush.bf16.msra.mxu0 %v482
        %498 = vmatmul.bf16.gmra.mxu0 %v488
        %v499 = vpop.f32.mrf.mxu0
        %v500 = vadd.f32 %v467, %v499
        %v501 = vpop.f32.mrf.mxu0
        %v502 = vadd.f32 %v467, %v501
        %503 = vdwg.mxu0
        %v504 = vld [vmem:[#allocation7] sm:$0xf]
        %v505 = vld [vmem:[#allocation7 + $0x4] sm:$0xf]
        %v506 = vld [vmem:[#allocation7 + $0x8] sm:$0xf]
        %v507 = vld [vmem:[#allocation7 + $0xc] sm:$0xf]
        %v508 = vld [vmem:[%s6] sm:$0x1]
        %v510 = vperm.slane %v508, 0
        %v516 = vunpack.c.l.b16 %v457
        %v517 = vunpack.c.l.b16 %v458
        %v518 = vunpack.c.l.b16 %v459
        %v519 = vunpack.c.l.b16 %v460
        %v520 = vpack.c.b16 %v517, %v516
        %v521 = vpack.c.b16 %v519, %v518
        %v526 = vunpack.c.l.b16 %v504
        %v527 = vunpack.c.l.b16 %v505
        %v528 = vunpack.c.l.b16 %v506
        %v529 = vunpack.c.l.b16 %v507
        %v530 = vpack.c.b16 %v527, %v526
        %v531 = vpack.c.b16 %v529, %v528
        %v535 = vsel %vm486, %v520, 0
        %v538 = vsel %vm486, %v521, 0
        %540 = vmatpush.bf16.msra.mxu0 0
        %541 = vmatpush.bf16.msra.mxu0 0
        %542 = vmatpush.bf16.msra.mxu0 0
        %543 = vmatpush.bf16.msra.mxu0 0
        %544 = vmatpush.bf16.msra.mxu0 0
        %545 = vmatpush.bf16.msra.mxu0 0
        %546 = vmatpush.bf16.msra.mxu0 %v531
        %547 = vmatpush.bf16.msra.mxu0 %v530
        %548 = vmatmul.bf16.gmra.mxu0 %v535
        %v549 = vpop.f32.mrf.mxu0
        %v550 = vadd.f32 %v510, %v549
        %v551 = vpop.f32.mrf.mxu0
        %v552 = vadd.f32 %v510, %v551
        %553 = vmatmul.bf16.gmra.mxu0 %v538
        %v554 = vpop.f32.mrf.mxu0
        %v555 = vadd.f32 %v510, %v554
        %v556 = vpop.f32.mrf.mxu0
        %v557 = vadd.f32 %v510, %v556
        %558 = vdwg.mxu0
        %v559 = vpack.c.bf16 %v500, %v500
        %v560 = vpack.c.bf16 %v502, %v502
        %v561 = vpack.c.bf16 %v550, %v550
        %v562 = vpack.c.bf16 %v552, %v552
        %v563 = vpack.c.bf16 %v555, %v555
        %v564 = vpack.c.bf16 %v557, %v557
        %v565 = vld [vmem:[#allocation8] sm:$0xf]
        %v566 = vld [vmem:[#allocation8 + $0x4] sm:$0xf]
        %v567 = vld [vmem:[#allocation8 + $0x8] sm:$0xf]
        %v568 = vld [vmem:[#allocation8 + $0xc] sm:$0xf]
        %v571 = vunpack.c.l.b16 %v561
        %v572 = vunpack.c.l.b16 %v562
        %v573 = vpack.c.b16 %v572, %v571
        %v575 = vsel %vm486, %v559, 0
        %v578 = vsel %vm486, %v573, 0
        %580 = vmatpush.bf16.xpose.msra.mxu0 0
        %581 = vmatpush.bf16.xpose.msra.mxu0 0
        %582 = vmatpush.bf16.xpose.msra.mxu0 0
        %583 = vmatpush.bf16.xpose.msra.mxu0 0
        %584 = vmatpush.bf16.xpose.msra.mxu0 0
        %585 = vmatpush.bf16.xpose.msra.mxu0 0
        %586 = vmatpush.bf16.xpose.msra.mxu0 0
        %587 = vmatpush.bf16.xpose.msra.mxu0 %v578
        %588 = vmatmul.bf16.gmra.mxu0 %v575
        %v589 = vpop.f32.mrf.mxu0
        %v590 = vadd.f32 0.0, %v589
        %v591 = vpop.f32.mrf.mxu0
        %592 = vdwg.mxu0
        %v595 = vunpack.c.l.b16 %v563
        %v596 = vunpack.c.l.b16 %v564
        %v597 = vpack.c.b16 %v596, %v595
        %v599 = vsel %vm486, %v560, 0
        %v602 = vsel %vm486, %v597, 0
        %604 = vmatpush.bf16.xpose.msra.mxu0 0
        %605 = vmatpush.bf16.xpose.msra.mxu0 0
        %606 = vmatpush.bf16.xpose.msra.mxu0 0
        %607 = vmatpush.bf16.xpose.msra.mxu0 0
        %608 = vmatpush.bf16.xpose.msra.mxu0 0
        %609 = vmatpush.bf16.xpose.msra.mxu0 0
        %610 = vmatpush.bf16.xpose.msra.mxu0 0
        %611 = vmatpush.bf16.xpose.msra.mxu0 %v602
        %612 = vmatmul.bf16.gmra.mxu0 %v599
        %v613 = vpop.f32.mrf.mxu0
        %v614 = vadd.f32 0.0, %v613
        %v615 = vpop.f32.mrf.mxu0
        %616 = vdwg.mxu0
        %vm617 = vcmask 130048
        %v618 = vsel %vm617, %v590, -inf
        %619 = vmax.xlane.f32.xlu0 %v618
        %v620 = vpop.xlane.xlu0 %619
        %v621 = vsel %vm617, %v614, -inf
        %622 = vmax.xlane.f32.xlu0 %v621
        %v623 = vpop.xlane.xlu0 %622
        %v624 = vsub.f32 %v590, %v620
        %v625 = vsub.f32 %v614, %v623
        %v626 = vmul.f32 %v624, 1.442695
        %v627 = vpow.pop %v626
        %v628 = vmul.f32 %v625, 1.442695
        %v629 = vpow.pop %v628
        %v630 = vsel %vm617, %v627, 0.0
        %631 = vadd.xlane.f32.xlu0 %v630
        %v632 = vpop.xlane.xlu0 %631
        %v633 = vsel %vm617, %v629, 0.0
        %634 = vadd.xlane.f32.xlu0 %v633
        %v635 = vpop.xlane.xlu0 %634
        %v636 = vrcp.pop %v632
        %v637 = vrcp.pop %v635
        %v638 = vmul.f32 %v627, %v636
        %v639 = vmul.f32 %v629, %v637
        %v640 = vsel %vm617, %v638, 0.0
        %v641 = vrot.slane %v640, 4
        %v642 = vadd.f32 %v640, %v641
        %v643 = vrot.slane %v642, 2
        %v644 = vadd.f32 %v642, %v643
        %v645 = vrot.slane %v644, 1
        %v646 = vadd.f32 %v644, %v645
        %v647 = vsel %vm617, %v639, 0.0
        %v648 = vrot.slane %v647, 4
        %v649 = vadd.f32 %v647, %v648
        %v650 = vrot.slane %v649, 2
        %v651 = vadd.f32 %v649, %v650
        %v652 = vrot.slane %v651, 1
        %v653 = vadd.f32 %v651, %v652
        %v654 = vmul.f32 %v646, 0.125
        %v655 = vmul.f32 %v653, 0.125
        %656 = vrot.lane.b32.xlu0 %v573, 96
        %v657 = vpop.permute.xlu0 %656
        %v660 = vsel %vm617, %v654, 0
        %662 = vmatpush.bf16.msra.mxu0 0
        %663 = vmatpush.bf16.msra.mxu0 0
        %664 = vmatpush.bf16.msra.mxu0 0
        %665 = vmatpush.bf16.msra.mxu0 0
        %666 = vmatpush.bf16.msra.mxu0 0
        %667 = vmatpush.bf16.msra.mxu0 0
        %668 = vmatpush.bf16.msra.mxu0 0
        %669 = vmatpush.bf16.msra.mxu0 %v657
        %670 = vmatmul.f32.gmra.mxu0 %v660
        %v671 = vpop.f32.mrf.mxu0
        %v672 = vadd.f32 0.0, %v671
        %673 = vdwg.mxu0
        %674 = vrot.lane.b32.xlu0 %v597, 96
        %v675 = vpop.permute.xlu0 %674
        %v678 = vsel %vm617, %v655, 0
        %680 = vmatpush.bf16.msra.mxu0 0
        %681 = vmatpush.bf16.msra.mxu0 0
        %682 = vmatpush.bf16.msra.mxu0 0
        %683 = vmatpush.bf16.msra.mxu0 0
        %684 = vmatpush.bf16.msra.mxu0 0
        %685 = vmatpush.bf16.msra.mxu0 0
        %686 = vmatpush.bf16.msra.mxu0 0
        %687 = vmatpush.bf16.msra.mxu0 %v675
        %688 = vmatmul.f32.gmra.mxu0 %v678
        %v689 = vpop.f32.mrf.mxu0
        %v690 = vadd.f32 0.0, %v689
        %691 = vdwg.mxu0
        %v692 = vpack.c.bf16 %v672, %v672
        %v693 = vpack.c.bf16 %v690, %v690
        %v694 = vld [vmem:[%s7] sm:$0x1]
        %v696 = vperm.slane %v694, 0
        %v700 = vunpack.c.l.b16 %v692
        %v701 = vunpack.c.l.b16 %v693
        %v702 = vrot.slane %v701, 7
        %vm703 = vcmask 1041409
        %v704 = vsel %vm703, %v702, %v700
        %v705 = vpack.c.b16 %v704, %v704
        %v710 = vunpack.c.l.b16 %v565
        %v711 = vunpack.c.l.b16 %v566
        %v712 = vunpack.c.l.b16 %v567
        %v713 = vunpack.c.l.b16 %v568
        %v714 = vpack.c.b16 %v711, %v710
        %v715 = vpack.c.b16 %v713, %v712
        %v719 = vsel %vm486, %v705, 0
        %721 = vmatpush.bf16.msra.mxu0 0
        %722 = vmatpush.bf16.msra.mxu0 0
        %723 = vmatpush.bf16.msra.mxu0 0
        %724 = vmatpush.bf16.msra.mxu0 0
        %725 = vmatpush.bf16.msra.mxu0 0
        %726 = vmatpush.bf16.msra.mxu0 0
        %727 = vmatpush.bf16.msra.mxu0 %v715
        %728 = vmatpush.bf16.msra.mxu0 %v714
        %729 = vmatmul.bf16.gmra.mxu0 %v719
        %v730 = vpop.f32.mrf.mxu0
        %v731 = vadd.f32 %v696, %v730
        %v732 = vpop.f32.mrf.mxu0
        %733 = vdwg.mxu0
        %v734 = vpack.c.bf16 %v731, %v731
        %v735 = vld [vmem:[%s8] sm:$0xf]
        %v736 = vld [vmem:[%s8 + $0x4] sm:$0xf]
        %v737 = vld [vmem:[%s8 + $0x8] sm:$0xf]
        %v738 = vld [vmem:[%s8 + $0xc] sm:$0xf]
        %v739 = vld [vmem:[%s9] sm:$0x1]
        %v741 = vperm.slane %v739, 0
        %v747 = vunpack.c.l.b16 %v735
        %v748 = vunpack.c.l.b16 %v736
        %v749 = vunpack.c.l.b16 %v737
        %v750 = vunpack.c.l.b16 %v738
        %v751 = vpack.c.b16 %v748, %v747
        %v752 = vpack.c.b16 %v750, %v749
        %v756 = vsel %vm486, %v734, 0
        %758 = vmatpush.bf16.msra.mxu0 0
        %759 = vmatpush.bf16.msra.mxu0 0
        %760 = vmatpush.bf16.msra.mxu0 0
        %761 = vmatpush.bf16.msra.mxu0 0
        %762 = vmatpush.bf16.msra.mxu0 0
        %763 = vmatpush.bf16.msra.mxu0 0
        %764 = vmatpush.bf16.msra.mxu0 %v752
        %765 = vmatpush.bf16.msra.mxu0 %v751
        %766 = vmatmul.bf16.gmra.mxu0 %v756
        %v767 = vpop.f32.mrf.mxu0
        %v768 = vadd.f32 %v741, %v767
        %v769 = vpop.f32.mrf.mxu0
        %770 = vdwg.mxu0
        %v771 = vxor.u32 %v768, 2147483648
        %v772 = vmul.f32 %v771, 1.442695
        %v773 = vpow.pop %v772
        %v774 = vadd.f32 %v773, 1.0
        %v775 = vrcp.pop %v774
        %v776 = vmul.f32 %v774, %v775
        %v777 = vsub.f32 1.0, %v776
        %v778 = vmul.f32 %v775, %v777
        %v779 = vadd.f32 %v775, %v778
        %vm780 = vweird.f32 %v774
        %vm781 = vweird.f32 %v775
        %vm782 = vmor %vm780, %vm781
        %v783 = vsel %vm782, %v775, %v779
        %v784 = vand.u32 2147483647, %v774
        %vm785 = vcmp.eq.f32.partialorder %v784, 8.507059e+37
        %v786 = vand.u32 %v774, 2147483648
        %v787 = vor.u32 1.1754944e-38, %v786
        %v788 = vsel %vm785, %v787, %v783
        %v789 = vmul.f32 1.0, %v788
        %vm790 = vcmask 17408
        %v791 = vsel %vm790, %v789, 0.0
        %792 = vadd.xlane.f32.xlu0 %v791
        %v793 = vpop.xlane.xlu0 %792
        %v794 = vadd.f32 %v793, 1e-06
        %v795 = vrcp.pop %v794
        %v796 = vmul.f32 %v794, %v795
        %v797 = vsub.f32 1.0, %v796
        %v798 = vmul.f32 %v795, %v797
        %v799 = vadd.f32 %v795, %v798
        %vm800 = vweird.f32 %v794
        %vm801 = vweird.f32 %v795
        %vm802 = vmor %vm800, %vm801
        %v803 = vsel %vm802, %v795, %v799
        %v804 = vand.u32 2147483647, %v794
        %vm805 = vcmp.eq.f32.partialorder %v804, 8.507059e+37
        %v806 = vand.u32 %v794, 2147483648
        %v807 = vor.u32 1.1754944e-38, %v806
        %v808 = vsel %vm805, %v807, %v803
        %v809 = vmul.f32 %v789, %v808
        %810 = vst.msk [vmem:[%s446] sm:$0x3] %vm790, %v809
        %s811 = sand.u32 %s257, 1
        %s812 = scalar_lea.sflag [#allocation4], %s811
        %s813 = sand.u32 %s257, 1
        %s814 = smul.addr %s813, 2
        %s815 = scalar_lea.vmem [#allocation10], %s814
        // Predicated region
        $region77: #{tpu_custom_call.1} parent=59 // pred_check
          %p816 = pneg %p267
        $region78: #{tpu_custom_call.1} parent=59 // pred_check_branch
          %818 = sbr.rel (%p816) target = $region80
        $region79: #{tpu_custom_call.1} parent=59 // pred_region
          %820 = vsyncadd %s812, 0
          %s821 = smul.addr %s29, 2
          %s822 = scalar_lea.hbm %s10, %s821
          %s824 = sshll.u32 %s815, 4
          %s825 = int_to_ptr.vmem [resolvable:$true] %s824
          %s826 = sshll.u32 %s822, 4
          %s827 = int_to_ptr.hbm [resolvable:$true] %s826
          %829 = dma.vmem_to_hbm [thread:$0]  %s825, 32, %s827, %s812
        $region80: #{tpu_custom_call.1} parent=59 // pred_fallthru
          _
      $region60: #{tpu_custom_call.1} parent=5 // pred_fallthru
        _
      %p830 = scmp.le.s32.totalorder 2, %s24
      // Predicated region
      $region81: #{tpu_custom_call.1} parent=5 // pred_check
        %p831 = pneg %p830
      $region82: #{tpu_custom_call.1} parent=5 // pred_check_branch
        %833 = sbr.rel (%p831) target = $region84
      $region83: #{tpu_custom_call.1} parent=5 // pred_region
        %s834 = ssub.s32 %s24, 2
        // Predicated region
        $region85: #{tpu_custom_call.1} parent=83 // pred_check
          %p835 = pneg %p273
        $region86: #{tpu_custom_call.1} parent=83 // pred_check_branch
          %837 = sbr.rel (%p835) target = $region88
        $region87: #{tpu_custom_call.1} parent=83 // pred_region
          %s838 = sand.u32 %s258, 1
          %s839 = scalar_lea.sflag [#allocation4], %s838
          %s840 = sand.u32 %s258, 1
          %s841 = smul.addr %s840, 2
          %s842 = scalar_lea.vmem [#allocation10], %s841
          %844 = dma.done %s839, 32
        $region88: #{tpu_custom_call.1} parent=83 // pred_fallthru
          _
      $region84: #{tpu_custom_call.1} parent=5 // pred_fallthru
        _
    $region6: #{tpu_custom_call.1} parent=1 // loop_footer
      %s28 = sadd.s32 1, %s24
    $region7: #{tpu_custom_call.1} parent=1 // loop_footer_branch
      %23 = sbr.rel target = $region3
    $region8: #{tpu_custom_call.1} parent=1 // loop_exit
      _
    %845 = vsyncpa [#allocation3], 1
    %s846 = scalar_lea.sflag [#allocation3], 1
    %847 = vsyncpa %s846, 1
    %848 = vsyncpa [#allocation6], 1
    %849 = vsyncpa [#allocation9], 1
    %850 = vsyncpa [#allocation4], 1
    %s851 = scalar_lea.sflag [#allocation4], 1
    %852 = vsyncpa %s851, 1

</llo_original>
